<compile_context>
chip_gen: v6e
topology: v6e:2x2x1
jax: 0.10.0
libtpu: 0.0.40
codegen_flags: <defaults>
</compile_context>

<pallas_src>
import functools

import jax
import jax.numpy as jnp
from jax import lax
from jax.experimental import pallas as pl
from jax.experimental.pallas import tpu as pltpu

LANES = 128
SUBLANES = 8
NUM_CORES = 2                 # v7x has 2 TCs; harmless (2 sequential chunks) on v5e/v6e
DEFAULT_BLOCK_ROWS = 2048     # 2048 x 128 x 4 B = 1 MiB per input per block


def _wbce_kernel(s_ref, t_ref, o_ref, acc_ref, *,
                 w0, w1, label_smoothing, eps,
                 n_valid, blk_rows, blocks_per_core):
    c = pl.program_id(0)      # core / outer-chunk index
    i = pl.program_id(1)      # block index within the chunk

    @pl.when(i == 0)
    def _init():
        acc_ref[...] = jnp.zeros_like(acc_ref)

    s = s_ref[...].astype(jnp.float32)
    t = t_ref[...].astype(jnp.float32)

    # hardtanh(targets, ls, 1 - ls) == clamp
    nt = jnp.clip(t, label_smoothing, 1.0 - label_smoothing)
    loss = (-w0 * nt * jnp.log(s + eps)
            - w1 * (1.0 - nt) * jnp.log(1.0 - s + eps))

    # Global (unclamped) block index and flat element offset of this block.
    # TODO(synk): int32 flat indices overflow past ~2^31 elements; fine for any
    # realistic NCHW loss input.
    block_elems = blk_rows * LANES
    gb = c * blocks_per_core + i
    start = gb * block_elems
    is_full = start + block_elems <= n_valid   # block entirely within valid data

    @pl.when(is_full)
    def _fast():
        # Pure VPU: fold the block down to one (8, 128) vreg of partial sums.
        acc_ref[...] += jnp.sum(loss.reshape(-1, SUBLANES, LANES), axis=0)

    @pl.when(jnp.logical_not(is_full))
    def _masked():
        # Only the block straddling n_valid (and ghost blocks from the core
        # split) pays for the mask.
        row_ids = lax.broadcasted_iota(jnp.int32, loss.shape, 0)
        col_ids = lax.broadcasted_iota(jnp.int32, loss.shape, 1)
        flat = start + row_ids * LANES + col_ids
        masked = jnp.where(flat < n_valid, loss, 0.0)
        acc_ref[...] += jnp.sum(masked.reshape(-1, SUBLANES, LANES), axis=0)

    @pl.when(i == pl.num_programs(1) - 1)
    def _finalize():
        o_ref[...] = acc_ref[...]   # lane-dense per-core partial sums


def weighted_bce_loss(scores, targets, weights, label_smoothing=0.0,
                      eps=1e-8, block_rows=DEFAULT_BLOCK_ROWS):
    """Matches Weighted_BCE_Loss.forward. Returns a scalar f32."""
    assert scores.shape == targets.shape
    n_valid = scores.size

    s_flat = scores.reshape(-1)
    t_flat = targets.reshape(-1)

    # Pad only the ragged tail to a multiple of one (8,128) tile.  For typical
    # NCHW sizes this is a no-op (no extra HBM round-trip).  Pad values 0.5 are
    # benign (finite loss) and are masked out in-kernel anyway.
    tile_elems = SUBLANES * LANES
    pad = (-n_valid) % tile_elems
    if pad:
        s_flat = jnp.pad(s_flat, (0, pad), constant_values=0.5)
        t_flat = jnp.pad(t_flat, (0, pad), constant_values=0.5)

    rows = (n_valid + pad) // LANES            # multiple of 8
    blk_rows = min(block_rows, rows)           # multiple of 8
    total_blocks = pl.cdiv(rows, blk_rows)
    blocks_per_core = pl.cdiv(total_blocks, NUM_CORES)

    s2d = s_flat.reshape(rows, LANES)
    t2d = t_flat.reshape(rows, LANES)

    def in_map(c, i):
        # Clamp ghost blocks (from the ragged core split) onto the last real
        # block; the kernel zeros their contribution via the global flat index.
        return (jnp.minimum(c * blocks_per_core + i, total_blocks - 1), 0)

    # TODO(synk): weights / label_smoothing / eps are baked as compile-time
    # constants (module hyperparameters); pass via SMEM scalars if they ever
    # need to be traced values.
    kernel = functools.partial(
        _wbce_kernel,
        w0=float(weights[0]), w1=float(weights[1]),
        label_smoothing=float(label_smoothing), eps=float(eps),
        n_valid=n_valid, blk_rows=blk_rows, blocks_per_core=blocks_per_core)

    partials = pl.pallas_call(
        kernel,
        out_shape=jax.ShapeDtypeStruct((NUM_CORES * SUBLANES, LANES),
                                       jnp.float32),
        grid_spec=pltpu.PrefetchScalarGridSpec(
            num_scalar_prefetch=0,
            grid=(NUM_CORES, blocks_per_core),
            in_specs=[
                pl.BlockSpec((blk_rows, LANES), in_map),
                pl.BlockSpec((blk_rows, LANES), in_map),
            ],
            out_specs=pl.BlockSpec((SUBLANES, LANES), lambda c, i: (c, 0)),
            scratch_shapes=[pltpu.VMEM((SUBLANES, LANES), jnp.float32)],
        ),
        compiler_params=pltpu.CompilerParams(
            dimension_semantics=("parallel", "arbitrary")),
    )(s2d, t2d)

    # Tiny final reduce + mean outside the kernel.
    return jnp.sum(partials) / jnp.float32(n_valid)


def weighted_bce_loss_ref(scores, targets, weights, label_smoothing=0.0,
                          eps=1e-8):
    nt = jnp.clip(targets.astype(jnp.float32), label_smoothing,
                  1.0 - label_smoothing)
    s = scores.astype(jnp.float32)
    return jnp.mean(-weights[0] * nt * jnp.log(s + eps)
                    - weights[1] * (1.0 - nt) * jnp.log(1.0 - s + eps))


if __name__ == "__main__":
    key = jax.random.PRNGKey(0)
    weights = (0.6, 0.4)
    label_smoothing = 0.05
    eps = 1e-8

    ok = True

    # Test 1: NCHW inputs, small shape: batch=2, channels=4, spatial=16x16
    # (numel is a multiple of 1024 -> no-pad fast path).
    k1, k2 = jax.random.split(key)
    shape = (2, 4, 16, 16)
    scores = jax.random.uniform(k1, shape, dtype=jnp.float32,
                                minval=0.01, maxval=0.99)
    targets = (jax.random.uniform(k2, shape, dtype=jnp.float32) > 0.5
               ).astype(jnp.float32)
    out = weighted_bce_loss(scores, targets, weights, label_smoothing, eps)
    out = jax.block_until_ready(out)
    ref = weighted_bce_loss_ref(scores, targets, weights, label_smoothing, eps)
    ok &= bool(jnp.allclose(out, ref, rtol=1e-5, atol=1e-6))

    # Test 2: ragged size (exercises tail pad + masked block + ghost block).
    k3, k4 = jax.random.split(k2)
    shape2 = (2, 3, 7, 11)
    scores2 = jax.random.uniform(k3, shape2, dtype=jnp.float32,
                                 minval=0.01, maxval=0.99)
    targets2 = (jax.random.uniform(k4, shape2, dtype=jnp.float32) > 0.5
                ).astype(jnp.float32)
    out2 = weighted_bce_loss(scores2, targets2, weights, label_smoothing, eps)
    out2 = jax.block_until_ready(out2)
    ref2 = weighted_bce_loss_ref(scores2, targets2, weights,
                                 label_smoothing, eps)
    ok &= bool(jnp.allclose(out2, ref2, rtol=1e-5, atol=1e-6))

    assert ok, (out, ref, out2, ref2)
    print("KERNEL_OK")
</pallas_src>

<mosaic_0001>
module attributes {stable_mosaic.version = 11 : i64} {
  func.func @_wbce_kernel(%arg0: i32, %arg1: i32, %arg2: memref<16x128xf32, #tpu.memory_space<vmem>>, %arg3: memref<16x128xf32, #tpu.memory_space<vmem>>, %arg4: memref<8x128xf32, #tpu.memory_space<vmem>>, %arg5: memref<8x128xf32, #tpu.memory_space<vmem>>) attributes {dimension_semantics = [#tpu.dimension_semantics<parallel>, #tpu.dimension_semantics<arbitrary>], iteration_bounds = array<i64: 2, 1>, scalar_prefetch = 0 : i64, scratch_operands = 1 : i64, tpu.core_type = #tpu.core_type<tc>, window_params = [{transform_indices = @transform_0, window_bounds = array<i64: 16, 128>}, {transform_indices = @transform_1, window_bounds = array<i64: 16, 128>}, {transform_indices = @transform_2, window_bounds = array<i64: 8, 128>}]} {
    %c0_i32 = arith.constant 0 : i32
    %0 = arith.cmpi eq, %arg1, %c0_i32 : i32
    %1 = arith.extui %0 : i1 to i32
    %c0_i32_0 = arith.constant 0 : i32
    %2 = arith.cmpi ne, %1, %c0_i32_0 : i32
    scf.if %2 {
      %cst_17 = arith.constant 0.000000e+00 : f32
      %39 = vector.broadcast %cst_17 : f32 to vector<8x128xf32>
      %c0_18 = arith.constant 0 : index
      %c0_19 = arith.constant 0 : index
      %40 = vector.load %arg5[%c0_18, %c0_19] : memref<8x128xf32, #tpu.memory_space<vmem>>, vector<8x128xf32>
      tpu.vector_store %arg5[%c0_18, %c0_19], %39 {strides = array<i32>} : memref<8x128xf32, #tpu.memory_space<vmem>>, vector<8x128xf32>,
    } else {
    }
    %c0 = arith.constant 0 : index
    %c0_1 = arith.constant 0 : index
    %3 = vector.load %arg2[%c0, %c0_1] : memref<16x128xf32, #tpu.memory_space<vmem>>, vector<16x128xf32>
    %c0_2 = arith.constant 0 : index
    %c0_3 = arith.constant 0 : index
    %4 = vector.load %arg3[%c0_2, %c0_3] : memref<16x128xf32, #tpu.memory_space<vmem>>, vector<16x128xf32>
    %cst = arith.constant 5.000000e-02 : f32
    %cst_4 = arith.constant 0.949999988 : f32
    %5 = vector.broadcast %cst : f32 to vector<16x128xf32>
    %6 = arith.maximumf %5, %4 : vector<16x128xf32>
    %7 = vector.broadcast %cst_4 : f32 to vector<16x128xf32>
    %8 = arith.minimumf %7, %6 : vector<16x128xf32>
    %cst_5 = arith.constant -6.000000e-01 : f32
    %9 = vector.broadcast %cst_5 : f32 to vector<16x128xf32>
    %10 = arith.mulf %9, %8 : vector<16x128xf32>
    %cst_6 = arith.constant 9.99999993E-9 : f32
    %11 = vector.broadcast %cst_6 : f32 to vector<16x128xf32>
    %12 = arith.addf %3, %11 : vector<16x128xf32>
    %13 = math.log %12 : vector<16x128xf32>
    %14 = arith.mulf %10, %13 : vector<16x128xf32>
    %cst_7 = arith.constant 1.000000e+00 : f32
    %15 = vector.broadcast %cst_7 : f32 to vector<16x128xf32>
    %16 = arith.subf %15, %8 : vector<16x128xf32>
    %cst_8 = arith.constant 4.000000e-01 : f32
    %17 = vector.broadcast %cst_8 : f32 to vector<16x128xf32>
    %18 = arith.mulf %17, %16 : vector<16x128xf32>
    %cst_9 = arith.constant 1.000000e+00 : f32
    %19 = vector.broadcast %cst_9 : f32 to vector<16x128xf32>
    %20 = arith.subf %19, %3 : vector<16x128xf32>
    %cst_10 = arith.constant 9.99999993E-9 : f32
    %21 = vector.broadcast %cst_10 : f32 to vector<16x128xf32>
    %22 = arith.addf %20, %21 : vector<16x128xf32>
    %23 = math.log %22 : vector<16x128xf32>
    %24 = arith.mulf %18, %23 : vector<16x128xf32>
    %25 = arith.subf %14, %24 : vector<16x128xf32>
    %c1_i32 = arith.constant 1 : i32
    %26 = arith.muli %arg0, %c1_i32 : i32
    %27 = arith.addi %26, %arg1 : i32
    %c2048_i32 = arith.constant 2048 : i32
    %28 = arith.muli %27, %c2048_i32 : i32
    %c2048_i32_11 = arith.constant 2048 : i32
    %29 = arith.addi %28, %c2048_i32_11 : i32
    %c2048_i32_12 = arith.constant 2048 : i32
    %30 = arith.cmpi sle, %29, %c2048_i32_12 : i32
    %31 = arith.extui %30 : i1 to i32
    %c0_i32_13 = arith.constant 0 : i32
    %32 = arith.cmpi ne, %31, %c0_i32_13 : i32
    scf.if %32 {
      %c0_17 = arith.constant 0 : index
      %c0_18 = arith.constant 0 : index
      %39 = vector.load %arg5[%c0_17, %c0_18] : memref<8x128xf32, #tpu.memory_space<vmem>>, vector<8x128xf32>
      %40 = vector.shape_cast %25 : vector<16x128xf32> to vector<2x8x128xf32>
      %cst_19 = arith.constant dense<0.000000e+00> : vector<8x128xf32>
      %41 = vector.multi_reduction <add>, %40, %cst_19 [0] : vector<2x8x128xf32> to vector<8x128xf32>
      %42 = arith.addf %39, %41 : vector<8x128xf32>
      %c0_20 = arith.constant 0 : index
      %c0_21 = arith.constant 0 : index
      %43 = vector.load %arg5[%c0_20, %c0_21] : memref<8x128xf32, #tpu.memory_space<vmem>>, vector<8x128xf32>
      tpu.vector_store %arg5[%c0_20, %c0_21], %42 {strides = array<i32>} : memref<8x128xf32, #tpu.memory_space<vmem>>, vector<8x128xf32>,
    } else {
    }
    %true = arith.constant true
    %33 = arith.xori %30, %true : i1
    %34 = arith.extui %33 : i1 to i32
    %c0_i32_14 = arith.constant 0 : i32
    %35 = arith.cmpi ne, %34, %c0_i32_14 : i32
    scf.if %35 {
      %39 = tpu.iota {dimensions = array<i32: 0>} : vector<16x128xi32>
      %40 = tpu.iota {dimensions = array<i32: 1>} : vector<16x128xi32>
      %c128_i32 = arith.constant 128 : i32
      %41 = vector.broadcast %c128_i32 : i32 to vector<16x128xi32>
      %42 = arith.muli %39, %41 : vector<16x128xi32>
      %43 = vector.broadcast %28 : i32 to vector<16x128xi32>
      %44 = arith.addi %43, %42 : vector<16x128xi32>
      %45 = arith.addi %44, %40 : vector<16x128xi32>
      %c2048_i32_17 = arith.constant 2048 : i32
      %46 = vector.broadcast %c2048_i32_17 : i32 to vector<16x128xi32>
      %47 = arith.cmpi slt, %45, %46 : vector<16x128xi32>
      %cst_18 = arith.constant 0.000000e+00 : f32
      %48 = vector.broadcast %cst_18 : f32 to vector<16x128xf32>
      %49 = arith.select %47, %25, %48 : vector<16x128xi1>, vector<16x128xf32>
      %c0_19 = arith.constant 0 : index
      %c0_20 = arith.constant 0 : index
      %50 = vector.load %arg5[%c0_19, %c0_20] : memref<8x128xf32, #tpu.memory_space<vmem>>, vector<8x128xf32>
      %51 = vector.shape_cast %49 : vector<16x128xf32> to vector<2x8x128xf32>
      %cst_21 = arith.constant dense<0.000000e+00> : vector<8x128xf32>
      %52 = vector.multi_reduction <add>, %51, %cst_21 [0] : vector<2x8x128xf32> to vector<8x128xf32>
      %53 = arith.addf %50, %52 : vector<8x128xf32>
      %c0_22 = arith.constant 0 : index
      %c0_23 = arith.constant 0 : index
      %54 = vector.load %arg5[%c0_22, %c0_23] : memref<8x128xf32, #tpu.memory_space<vmem>>, vector<8x128xf32>
      tpu.vector_store %arg5[%c0_22, %c0_23], %53 {strides = array<i32>} : memref<8x128xf32, #tpu.memory_space<vmem>>, vector<8x128xf32>,
    } else {
    }
    %c0_i32_15 = arith.constant 0 : i32
    %36 = arith.cmpi eq, %arg1, %c0_i32_15 : i32
    %37 = arith.extui %36 : i1 to i32
    %c0_i32_16 = arith.constant 0 : i32
    %38 = arith.cmpi ne, %37, %c0_i32_16 : i32
    scf.if %38 {
      %c0_17 = arith.constant 0 : index
      %c0_18 = arith.constant 0 : index
      %39 = vector.load %arg5[%c0_17, %c0_18] : memref<8x128xf32, #tpu.memory_space<vmem>>, vector<8x128xf32>
      %c0_19 = arith.constant 0 : index
      %c0_20 = arith.constant 0 : index
      %40 = vector.load %arg4[%c0_19, %c0_20] : memref<8x128xf32, #tpu.memory_space<vmem>>, vector<8x128xf32>
      tpu.vector_store %arg4[%c0_19, %c0_20], %39 {strides = array<i32>} : memref<8x128xf32, #tpu.memory_space<vmem>>, vector<8x128xf32>,
    } else {
    }
    return
  }
  func.func @transform_0(%arg0: i32, %arg1: i32) -> (i32, i32) {
    %c1_i32 = arith.constant 1 : i32
    %0 = arith.muli %arg0, %c1_i32 : i32
    %1 = arith.addi %0, %arg1 : i32
    %c0_i32 = arith.constant 0 : i32
    %2 = arith.minsi %1, %c0_i32 : i32
    %c0_i32_0 = arith.constant 0 : i32
    %c0_i32_1 = arith.constant 0 : i32
    return %2, %c0_i32_0 : i32, i32
  }
  func.func @transform_1(%arg0: i32, %arg1: i32) -> (i32, i32) {
    %c1_i32 = arith.constant 1 : i32
    %0 = arith.muli %arg0, %c1_i32 : i32
    %1 = arith.addi %0, %arg1 : i32
    %c0_i32 = arith.constant 0 : i32
    %2 = arith.minsi %1, %c0_i32 : i32
    %c0_i32_0 = arith.constant 0 : i32
    %c0_i32_1 = arith.constant 0 : i32
    return %2, %c0_i32_0 : i32, i32
  }
  func.func @transform_2(%arg0: i32, %arg1: i32) -> (i32, i32) {
    %c0_i32 = arith.constant 0 : i32
    %c0_i32_0 = arith.constant 0 : i32
    return %arg0, %c0_i32 : i32, i32
  }
}

</mosaic_0001>

<llo_original>
// kernel: tpu_custom_call.1
$region0: #{tpu_custom_call.1}
  #allocation0 [shape = 'u32[]', space=smem, size = 0x4, offset = 0x4, fixed_abs, tag = 'smem constant byte address 0x4 - core index']
  #allocation1 [shape = 'u32[144,128]{1,0:T(1,128)}', space=vmem, size = 0x12000, scoped, tag = 'internal scratch']
  #allocation2 [shape = 'f32[8,128]{1,0:T(8,128)}', space=vmem, size = 0x1000, scoped, tag = 'scratch operand']
  %s0 = inlined_call_operand.hbm [shape: f32[16,128], index: 0, kind: input, shape index: {}]
  %s1 = inlined_call_operand.hbm [shape: f32[16,128], index: 1, kind: input, shape index: {}]
  %s2 = inlined_call_operand.hbm [shape: f32[16,128], index: 2, kind: output, shape index: {}]
  %s3 = sld [smem:[#allocation0]]
  $region65: #{tpu_custom_call.1} parent=0
    _
  %s5 = ssub.s32 1, %s3
  %s6 = scalar_select 0, %s5, %s3
  $region1: #{tpu_custom_call.1} parent=0
    #allocation3 [shape = 'u8[16384]{0}', space=vmem, size = 0x4000, scoped, tag = 'input window, operand 0']
    #allocation4 [shape = 's32[2]{0}', space=sflag, size = 0x8, scoped, tag = 'scoped memory for tpu_custom_call.1']
    #allocation5 [shape = 's32[2]{0}', space=sflag, size = 0x8, scoped, tag = 'scoped memory for tpu_custom_call.1']
    #allocation6 [shape = 'u8[16384]{0}', space=vmem, size = 0x4000, scoped, tag = 'input window, operand 1']
    #allocation7 [shape = 's32[2]{0}', space=sflag, size = 0x8, scoped, tag = 'scoped memory for tpu_custom_call.1']
    #allocation8 [shape = 'u8[8192]{0}', space=vmem, size = 0x2000, scoped, tag = 'output window, operand 0']
    %7 = vsyncpa [#allocation4], 0
    %s8 = scalar_lea.sflag [#allocation4], 1
    %9 = vsyncpa %s8, 0
    %10 = vsyncpa [#allocation7], 0
    %s11 = scalar_lea.sflag [#allocation7], 1
    %12 = vsyncpa %s11, 0
    %13 = vsyncpa [#allocation5], 0
    %s14 = scalar_lea.sflag [#allocation5], 1
    %15 = vsyncpa %s14, 0
    loop: start=0, step=1, limit=4
    $region2: #{tpu_custom_call.1} parent=1 // loop_pre_header
      _
    $region3: #{tpu_custom_call.1} parent=1 // loop_header
      %s17 = sphi 0, %s21
      %p18 = scmp.ge.s32.totalorder %s17, 4
      %s24 = sphi 0, %s36
      %s25 = sphi 0, %s32
      %s26 = sphi 0, %s24
      %s27 = sphi 0, %s25
      %s28 = sphi 0, %s26
      %s29 = sphi 0, %s27
      %s45 = sphi 0, %s47
      %s48 = sphi 0, %s45
      %s49 = sphi 0, %s48
      %s65 = sphi 0, %s49
      %s77 = sphi 0, %s79
      %s80 = sphi 0, %s77
      %s81 = sphi 0, %s80
      %s97 = sphi 0, %s81
      %s103 = sphi 0, %s105
      %s106 = sphi 0, %s103
      %s107 = sphi 0, %s106
      %s123 = sphi 0, %s107
    $region4: #{tpu_custom_call.1} parent=1 // loop_header_branch
      %20 = sbr.rel (%p18) target = $region8
    $region5: #{tpu_custom_call.1} parent=1 // loop_body
      %s22 = ssub.s32 %s17, 1
      %s23 = ssub.s32 %s17, 2
      %s30 = sadd.s32 1, %s25
      %p31 = scmp.ge.s32.totalorder %s30, 1
      %s32 = scalar_select %p31, 0, %s30
      %s33 = sadd.s32 1, %s24
      %s34 = scalar_select %p31, %s33, %s24
      %p35 = scmp.ge.s32.totalorder %s34, 2
      %s36 = scalar_select %p35, 0, %s34
      %s37 = sadd.s32 %s24, %s25
      %p38 = scmp.lt.s32.totalorder %s37, 0
      %s39 = scalar_select %p38, %s37, 0
      %s40 = sadd.s32 %s36, %s32
      %p41 = scmp.lt.s32.totalorder %s40, 0
      %s42 = scalar_select %p41, %s40, 0
      %s43 = ssub.s32 %s39, %s42
      %p44 = scmp.eq.s32.totalorder %s43, 0
      %s46 = sadd.s32 %s45, 1
      %s47 = scalar_select %p44, %s45, %s46
      %p50 = pneg %p44
      %p51 = scmp.eq.s32.totalorder %s17, 1
      %p52 = por %p50, %p51
      %p53 = scmp.ne.s32.totalorder %s45, %s48
      %p54 = scmp.eq.s32.totalorder %s17, 0
      %p55 = por %p53, %p54
      %p56 = scmp.ne.s32.totalorder %s45, %s48
      %p57 = scmp.eq.s32.totalorder %s22, 1
      %p58 = por %p56, %p57
      %p59 = scmp.ne.s32.totalorder %s48, %s49
      %p60 = scmp.eq.s32.totalorder %s22, 0
      %p61 = por %p59, %p60
      %p62 = scmp.ne.s32.totalorder %s48, %s49
      %p63 = scmp.eq.s32.totalorder %s23, 1
      %p64 = por %p62, %p63
      %p66 = scmp.ne.s32.totalorder %s49, %s65
      %p67 = scmp.eq.s32.totalorder %s23, 0
      %p68 = por %p66, %p67
      %s69 = sadd.s32 %s24, %s25
      %p70 = scmp.lt.s32.totalorder %s69, 0
      %s71 = scalar_select %p70, %s69, 0
      %s72 = sadd.s32 %s36, %s32
      %p73 = scmp.lt.s32.totalorder %s72, 0
      %s74 = scalar_select %p73, %s72, 0
      %s75 = ssub.s32 %s71, %s74
      %p76 = scmp.eq.s32.totalorder %s75, 0
      %s78 = sadd.s32 %s77, 1
      %s79 = scalar_select %p76, %s77, %s78
      %p82 = pneg %p76
      %p83 = scmp.eq.s32.totalorder %s17, 1
      %p84 = por %p82, %p83
      %p85 = scmp.ne.s32.totalorder %s77, %s80
      %p86 = scmp.eq.s32.totalorder %s17, 0
      %p87 = por %p85, %p86
      %p88 = scmp.ne.s32.totalorder %s77, %s80
      %p89 = scmp.eq.s32.totalorder %s22, 1
      %p90 = por %p88, %p89
      %p91 = scmp.ne.s32.totalorder %s80, %s81
      %p92 = scmp.eq.s32.totalorder %s22, 0
      %p93 = por %p91, %p92
      %p94 = scmp.ne.s32.totalorder %s80, %s81
      %p95 = scmp.eq.s32.totalorder %s23, 1
      %p96 = por %p94, %p95
      %p98 = scmp.ne.s32.totalorder %s81, %s97
      %p99 = scmp.eq.s32.totalorder %s23, 0
      %p100 = por %p98, %p99
      %s101 = ssub.s32 %s24, %s36
      %p102 = scmp.eq.s32.totalorder %s101, 0
      %s104 = sadd.s32 %s103, 1
      %s105 = scalar_select %p102, %s103, %s104
      %p108 = pneg %p102
      %p109 = scmp.eq.s32.totalorder %s17, 1
      %p110 = por %p108, %p109
      %p111 = scmp.ne.s32.totalorder %s103, %s106
      %p112 = scmp.eq.s32.totalorder %s17, 0
      %p113 = por %p111, %p112
      %p114 = scmp.ne.s32.totalorder %s103, %s106
      %p115 = scmp.eq.s32.totalorder %s22, 1
      %p116 = por %p114, %p115
      %p117 = scmp.ne.s32.totalorder %s106, %s107
      %p118 = scmp.eq.s32.totalorder %s22, 0
      %p119 = por %p117, %p118
      %p120 = scmp.ne.s32.totalorder %s106, %s107
      %p121 = scmp.eq.s32.totalorder %s23, 1
      %p122 = por %p120, %p121
      %p124 = scmp.ne.s32.totalorder %s107, %s123
      %p125 = scmp.eq.s32.totalorder %s23, 0
      %p126 = por %p124, %p125
      %p127 = scmp.le.s32.totalorder 1, %s17
      %p128 = scmp.lt.s32.totalorder %s17, 3
      %p129 = pnand %p127, %p128
      %p130 = pneg %p129
      // Predicated region
      $region9: #{tpu_custom_call.1} parent=5 // pred_check
        _
      $region10: #{tpu_custom_call.1} parent=5 // pred_check_branch
        %132 = sbr.rel (%p129) target = $region12
      $region11: #{tpu_custom_call.1} parent=5 // pred_region
        %s133 = ssub.s32 %s17, 1
      $region12: #{tpu_custom_call.1} parent=5 // pred_fallthru
        _
      %p134 = scmp.lt.s32.totalorder %s17, 2
      // Predicated region
      $region13: #{tpu_custom_call.1} parent=5 // pred_check
        %p135 = pneg %p134
      $region14: #{tpu_custom_call.1} parent=5 // pred_check_branch
        %137 = sbr.rel (%p135) target = $region16
      $region15: #{tpu_custom_call.1} parent=5 // pred_region
        // Predicated region
        $region17: #{tpu_custom_call.1} parent=15 // pred_check
          %p138 = pneg %p55
        $region18: #{tpu_custom_call.1} parent=15 // pred_check_branch
          %140 = sbr.rel (%p138) target = $region20
        $region19: #{tpu_custom_call.1} parent=15 // pred_region
          %s141 = sand.u32 %s45, 1
          %s142 = scalar_lea.sflag [#allocation4], %s141
          %s143 = sand.u32 %s45, 1
          %s144 = smul.addr %s143, 16
          %s145 = scalar_lea.vmem [#allocation3], %s144
          %s146 = sadd.s32 %s24, %s25
          %p147 = scmp.lt.s32.totalorder %s146, 0
          %s148 = scalar_select %p147, %s146, 0
          %s149 = smul.u32 2, %s148
          %s151 = ssub.s32 256, 256
          %152 = vsyncadd %s142, %s151
          %s153 = smul.addr %s149, 128
          %s154 = scalar_lea.hbm %s0, %s153
          %s155 = sshll.u32 %s145, 4
          %s156 = int_to_ptr.vmem [resolvable:$true] %s155
          %161 = dma.hbm_to_vmem [thread:$0]  %s154, 256, %s156, %s142, 128, 128, 8
        $region20: #{tpu_custom_call.1} parent=15 // pred_fallthru
          _
        // Predicated region
        $region21: #{tpu_custom_call.1} parent=15 // pred_check
          %p162 = pneg %p87
        $region22: #{tpu_custom_call.1} parent=15 // pred_check_branch
          %164 = sbr.rel (%p162) target = $region24
        $region23: #{tpu_custom_call.1} parent=15 // pred_region
          %s165 = sand.u32 %s77, 1
          %s166 = scalar_lea.sflag [#allocation7], %s165
          %s167 = sand.u32 %s77, 1
          %s168 = smul.addr %s167, 16
          %s169 = scalar_lea.vmem [#allocation6], %s168
          %s170 = sadd.s32 %s24, %s25
          %p171 = scmp.lt.s32.totalorder %s170, 0
          %s172 = scalar_select %p171, %s170, 0
          %s173 = smul.u32 2, %s172
          %s175 = ssub.s32 256, 256
          %176 = vsyncadd %s166, %s175
          %s177 = smul.addr %s173, 128
          %s178 = scalar_lea.hbm %s1, %s177
          %s179 = sshll.u32 %s169, 4
          %s180 = int_to_ptr.vmem [resolvable:$true] %s179
          %185 = dma.hbm_to_vmem [thread:$0]  %s178, 256, %s180, %s166, 128, 128, 8
        $region24: #{tpu_custom_call.1} parent=15 // pred_fallthru
          _
      $region16: #{tpu_custom_call.1} parent=5 // pred_fallthru
        _
      %p186 = scmp.le.s32.totalorder 1, %s17
      %p187 = scmp.lt.s32.totalorder %s17, 3
      %p188 = pnand %p186, %p187
      %p189 = pneg %p188
      // Predicated region
      $region25: #{tpu_custom_call.1} parent=5 // pred_check
        _
      $region26: #{tpu_custom_call.1} parent=5 // pred_check_branch
        %191 = sbr.rel (%p188) target = $region28
      $region27: #{tpu_custom_call.1} parent=5 // pred_region
        %s192 = ssub.s32 %s17, 1
        %s193 = sand.u32 %s48, 1
        %s194 = scalar_lea.sflag [#allocation4], %s193
        %s195 = sand.u32 %s48, 1
        %s196 = smul.addr %s195, 16
        %s197 = scalar_lea.vmem [#allocation3], %s196
        // Predicated region
        $region29: #{tpu_custom_call.1} parent=27 // pred_check
          %p198 = pneg %p61
        $region30: #{tpu_custom_call.1} parent=27 // pred_check_branch
          %200 = sbr.rel (%p198) target = $region32
        $region31: #{tpu_custom_call.1} parent=27 // pred_region
          %201 = dma.done %s194, 256
        $region32: #{tpu_custom_call.1} parent=27 // pred_fallthru
          _
        %s202 = sand.u32 %s80, 1
        %s203 = scalar_lea.sflag [#allocation7], %s202
        %s204 = sand.u32 %s80, 1
        %s205 = smul.addr %s204, 16
        %s206 = scalar_lea.vmem [#allocation6], %s205
        // Predicated region
        $region33: #{tpu_custom_call.1} parent=27 // pred_check
          %p207 = pneg %p93
        $region34: #{tpu_custom_call.1} parent=27 // pred_check_branch
          %209 = sbr.rel (%p207) target = $region36
        $region35: #{tpu_custom_call.1} parent=27 // pred_region
          %210 = dma.done %s203, 256
        $region36: #{tpu_custom_call.1} parent=27 // pred_fallthru
          _
        %s211 = sand.u32 %s48, 1
        %s212 = scalar_lea.sflag [#allocation4], %s211
        %s213 = sand.u32 %s48, 1
        %s214 = smul.addr %s213, 16
        %s215 = scalar_lea.vmem [#allocation3], %s214
        %p216 = pneg %p61
        %p217 = pneg %p58
        %s218 = sand.u32 %s80, 1
        %s219 = scalar_lea.sflag [#allocation7], %s218
        %s220 = sand.u32 %s80, 1
        %s221 = smul.addr %s220, 16
        %s222 = scalar_lea.vmem [#allocation6], %s221
        %p223 = pneg %p93
        %p224 = pneg %p90
        %p225 = pneg %p119
        %p226 = pneg %p116
        %s227 = sand.u32 %s106, 1
        %s228 = scalar_lea.sflag [#allocation5], %s227
        %s229 = sand.u32 %s106, 1
        %s230 = smul.addr %s229, 8
        %s231 = scalar_lea.vmem [#allocation8], %s230
        %s232 = sadd.s32 %s26, %s27
        %p233 = scmp.lt.s32.totalorder %s232, 0
        %s234 = scalar_select %p233, %s232, 0
        %s235 = smul.u32 2, %s234
        %s236 = sadd.s32 %s26, %s27
        %p237 = scmp.lt.s32.totalorder %s236, 0
        %s238 = scalar_select %p237, %s236, 0
        %s239 = smul.u32 2, %s238
        %p240 = scmp.eq.s32.totalorder %s27, 0
        // Predicated region
        $region37: #{tpu_custom_call.1} parent=27 // pred_check
          %p241 = pneg %p240
        $region38: #{tpu_custom_call.1} parent=27 // pred_check_branch
          %243 = sbr.rel (%p241) target = $region40
        $region39: #{tpu_custom_call.1} parent=27 // pred_region
          %244 = vst [vmem:[#allocation2] sm:$0xff] 0.0
        $region40: #{tpu_custom_call.1} parent=27 // pred_fallthru
          _
        %v245 = vld [vmem:[%s197] sm:$0xff]
        %v246 = vld [vmem:[%s197 + $0x8] sm:$0xff]
        %v247 = vld [vmem:[%s206] sm:$0xff]
        %v248 = vld [vmem:[%s206 + $0x8] sm:$0xff]
        %v249 = vmax.f32 %v247, 0.05
        %v250 = vmax.f32 %v248, 0.05
        %v251 = vmin.f32 %v249, 0.95
        %v252 = vmin.f32 %v250, 0.95
        %v253 = vmul.f32 %v251, -0.6
        %v254 = vmul.f32 %v252, -0.6
        %v255 = vadd.f32 %v245, 1e-08
        %v256 = vadd.f32 %v246, 1e-08
        %v257 = vlog2.pop %v255
        %v258 = vmul.f32 %v257, 0.6931472
        %v259 = vlog2.pop %v256
        %v260 = vmul.f32 %v259, 0.6931472
        %v261 = vmul.f32 %v253, %v258
        %v262 = vmul.f32 %v254, %v260
        %v263 = vsub.f32 1.0, %v251
        %v264 = vsub.f32 1.0, %v252
        %v265 = vmul.f32 %v263, 0.4
        %v266 = vmul.f32 %v264, 0.4
        %v267 = vsub.f32 1.0, %v245
        %v268 = vsub.f32 1.0, %v246
        %v269 = vadd.f32 %v267, 1e-08
        %v270 = vadd.f32 %v268, 1e-08
        %v271 = vlog2.pop %v269
        %v272 = vmul.f32 %v271, 0.6931472
        %v273 = vlog2.pop %v270
        %v274 = vmul.f32 %v273, 0.6931472
        %v275 = vmul.f32 %v265, %v272
        %v276 = vmul.f32 %v266, %v274
        %v277 = vsub.f32 %v261, %v275
        %v278 = vsub.f32 %v262, %v276
        %s279 = sadd.s32 %s26, %s27
        %s280 = smul.u32 %s279, 2048
        %s281 = sadd.s32 %s280, 2048
        %p282 = scmp.le.s32.totalorder %s281, 2048
        // Predicated region
        $region41: #{tpu_custom_call.1} parent=27 // pred_check
          %p283 = pneg %p282
        $region42: #{tpu_custom_call.1} parent=27 // pred_check_branch
          %285 = sbr.rel (%p283) target = $region44
        $region43: #{tpu_custom_call.1} parent=27 // pred_region
          %v286 = vld [vmem:[#allocation2] sm:$0xff]
          %v287 = vadd.f32 %v277, %v278
          %v288 = vadd.f32 %v286, %v287
          %289 = vst [vmem:[#allocation2] sm:$0xff] %v288
        $region44: #{tpu_custom_call.1} parent=27 // pred_fallthru
          _
        %p290 = scmp.gt.s32.totalorder %s281, 2048
        // Predicated region
        $region45: #{tpu_custom_call.1} parent=27 // pred_check
          %p291 = pneg %p290
        $region46: #{tpu_custom_call.1} parent=27 // pred_check_branch
          %293 = sbr.rel (%p291) target = $region48
        $region47: #{tpu_custom_call.1} parent=27 // pred_region
          %v294 = vlaneseq
          %v295 = vshrl.u32 %v294, 7
          %v296 = vadd.s32 %v295, 8
          %v297 = vlaneseq
          %v298 = vand.u32 %v297, 127
          %v299 = vmul.u32 %v295, 128
          %v300 = vmul.u32 %v296, 128
          %v301 = vstv %s280
          %v302 = vadd.s32 %v301, %v299
          %v303 = vadd.s32 %v301, %v300
          %v304 = vadd.s32 %v302, %v298
          %v305 = vadd.s32 %v303, %v298
          %vm306 = vcmp.lt.s32.totalorder %v304, 2048
          %vm307 = vcmp.lt.s32.totalorder %v305, 2048
          %v308 = vsel %vm306, %v277, 0.0
          %v309 = vsel %vm307, %v278, 0.0
          %v310 = vld [vmem:[#allocation2] sm:$0xff]
          %v311 = vadd.f32 %v308, %v309
          %v312 = vadd.f32 %v310, %v311
          %313 = vst [vmem:[#allocation2] sm:$0xff] %v312
        $region48: #{tpu_custom_call.1} parent=27 // pred_fallthru
          _
        // Predicated region
        $region49: #{tpu_custom_call.1} parent=27 // pred_check
          %p314 = pneg %p240
        $region50: #{tpu_custom_call.1} parent=27 // pred_check_branch
          %316 = sbr.rel (%p314) target = $region52
        $region51: #{tpu_custom_call.1} parent=27 // pred_region
          %v317 = vld [vmem:[#allocation2] sm:$0xff]
          %318 = vst [vmem:[%s231] sm:$0xff] %v317
        $region52: #{tpu_custom_call.1} parent=27 // pred_fallthru
          _
        %s319 = sand.u32 %s106, 1
        %s320 = scalar_lea.sflag [#allocation5], %s319
        %s321 = sand.u32 %s106, 1
        %s322 = smul.addr %s321, 8
        %s323 = scalar_lea.vmem [#allocation8], %s322
        // Predicated region
        $region53: #{tpu_custom_call.1} parent=27 // pred_check
          %p324 = pneg %p116
        $region54: #{tpu_custom_call.1} parent=27 // pred_check_branch
          %326 = sbr.rel (%p324) target = $region56
        $region55: #{tpu_custom_call.1} parent=27 // pred_region
          %s328 = ssub.s32 128, 128
          %329 = vsyncadd %s320, %s328
          %s330 = smul.addr %s26, 128
          %s331 = scalar_lea.hbm %s2, %s330
          %s333 = sshll.u32 %s323, 4
          %s334 = int_to_ptr.vmem [resolvable:$true] %s333
          %336 = dma.vmem_to_hbm [thread:$0]  %s334, 128, %s331, %s320
        $region56: #{tpu_custom_call.1} parent=27 // pred_fallthru
          _
      $region28: #{tpu_custom_call.1} parent=5 // pred_fallthru
        _
      %p337 = scmp.le.s32.totalorder 2, %s17
      // Predicated region
      $region57: #{tpu_custom_call.1} parent=5 // pred_check
        %p338 = pneg %p337
      $region58: #{tpu_custom_call.1} parent=5 // pred_check_branch
        %340 = sbr.rel (%p338) target = $region60
      $region59: #{tpu_custom_call.1} parent=5 // pred_region
        %s341 = ssub.s32 %s17, 2
        // Predicated region
        $region61: #{tpu_custom_call.1} parent=59 // pred_check
          %p342 = pneg %p122
        $region62: #{tpu_custom_call.1} parent=59 // pred_check_branch
          %344 = sbr.rel (%p342) target = $region64
        $region63: #{tpu_custom_call.1} parent=59 // pred_region
          %s345 = sand.u32 %s107, 1
          %s346 = scalar_lea.sflag [#allocation5], %s345
          %s347 = sand.u32 %s107, 1
          %s348 = smul.addr %s347, 8
          %s349 = scalar_lea.vmem [#allocation8], %s348
          %350 = dma.done %s346, 128
        $region64: #{tpu_custom_call.1} parent=59 // pred_fallthru
          _
      $region60: #{tpu_custom_call.1} parent=5 // pred_fallthru
        _
    $region6: #{tpu_custom_call.1} parent=1 // loop_footer
      %s21 = sadd.s32 1, %s17
    $region7: #{tpu_custom_call.1} parent=1 // loop_footer_branch
      %16 = sbr.rel target = $region3
    $region8: #{tpu_custom_call.1} parent=1 // loop_exit
      _
    %351 = vsyncpa [#allocation4], 1
    %s352 = scalar_lea.sflag [#allocation4], 1
    %353 = vsyncpa %s352, 1
    %354 = vsyncpa [#allocation7], 1
    %s355 = scalar_lea.sflag [#allocation7], 1
    %356 = vsyncpa %s355, 1
    %357 = vsyncpa [#allocation5], 1
    %s358 = scalar_lea.sflag [#allocation5], 1
    %359 = vsyncpa %s358, 1

</llo_original>
